<compile_context>
chip_gen: v5e
topology: v5e:2x2
jax: 0.10.0
libtpu: 0.0.40
codegen_flags: <defaults>
</compile_context>

<pallas_src>
import functools

import jax
import jax.numpy as jnp
from jax import lax
from jax.experimental import pallas as pl
from jax.experimental.pallas import tpu as pltpu


def _round_up(n, m):
    return ((n + m - 1) // m) * m


# --------------------------------------------------------------------------- #
# Kernel
# --------------------------------------------------------------------------- #
def generator_kernel(x_ref, w1_ref, b1_ref, w2_ref, b2_ref, w3_ref, b3_ref,
                     o_ref, *, chunk_b):
    """One batch tile.

    x_ref : (TILE_B, L)   input, natural batch-major layout (pipelined)
    w*_ref: (out, in)     transposed weights, bf16 (resident)
    b*_ref: (out, 1)      biases, f32 (resident)
    o_ref : (O, TILE_B)   feature-major output (lane-dense stores for O=2)
    """
    tile_b = x_ref.shape[0]

    # Tiny resident operands: load once per tile, keep in vregs across chunks.
    w1 = w1_ref[...]
    b1 = b1_ref[...]
    w2 = w2_ref[...]
    b2 = b2_ref[...]
    w3 = w3_ref[...]
    b3 = b3_ref[...]

    def compute(col0, nb):
        xb = x_ref[pl.ds(col0, nb), :].astype(w1.dtype)          # (nb, L) bf16
        # fc1: contract the shared L axis of W1^T (H, L) and x (nb, L)
        #      -> feature-major (H, nb) directly (no transpose of x anywhere).
        h1 = lax.dot_general(w1, xb,
                             dimension_numbers=(((1,), (1,)), ((), ())),
                             preferred_element_type=jnp.float32)
        h1 = jnp.maximum(h1 + b1, 0.0).astype(w2.dtype)
        # fc2 + ReLU
        h2 = jnp.dot(w2, h1, preferred_element_type=jnp.float32)
        h2 = jnp.maximum(h2 + b2, 0.0).astype(w3.dtype)
        # fout (no activation)
        out = jnp.dot(w3, h2, preferred_element_type=jnp.float32) + b3
        o_ref[:, pl.ds(col0, nb)] = out.astype(o_ref.dtype)

    # Chunk the compute over the batch tile so f32 intermediates stay bounded
    # (VMEM goes to the DMA'd x/out tiles instead).  chunk_b is a static,
    # 128-aligned Python int; the remainder chunk (also 128-aligned) is traced
    # separately so tile_b need not be a multiple of chunk_b.
    n_full = tile_b // chunk_b
    rem = tile_b - n_full * chunk_b

    if n_full > 0:
        def body(c, carry):
            compute(pl.multiple_of(c * chunk_b, 128), chunk_b)
            return carry
        lax.fori_loop(0, n_full, body, 0)
    if rem > 0:
        compute(n_full * chunk_b, rem)


# --------------------------------------------------------------------------- #
# Tile sizing (VMEM-derived, generation aware)
# --------------------------------------------------------------------------- #
def _vmem_budget_bytes():
    """Per-TensorCore VMEM budget with headroom (v7x: ~48 MiB, v5e/v6e: ~96 MiB)."""
    try:
        cap = int(pltpu.get_tpu_info().vmem_capacity_bytes)
    except Exception:
        cap = 64 * 1024 * 1024          # conservative fallback (v7x-sized VMEM)
    return min((cap * 3) // 4, 112 * 1024 * 1024)


def _pick_tile_b(L, H, O, in_itemsize, out_itemsize, chunk_b, vmem_budget,
                 max_tile=64 * 1024, user_tile=None):
    # Per-batch-column cost of the double-buffered DMA tiles.  The x block is
    # (tile_b, L); with L < 128 its lane axis pads to 128 in VMEM, so budget
    # for the padded footprint (worst case).
    x_col = 2 * _round_up(L, 128) * in_itemsize
    out_col = 2 * O * out_itemsize                      # feature-major, dense
    per_col = x_col + out_col
    # Fixed costs: resident weights/biases + one chunk worth of intermediates
    # (f32 + bf16 copies of h1/h2, f32 out chunk) + compiler slack.
    fixed = (H * L + H * H + O * H) * 2 + (2 * H + O) * 4
    fixed += chunk_b * (12 * H + 8 * O)
    fixed += 2 * 1024 * 1024
    avail = max(vmem_budget - fixed, 128 * per_col)
    tile = min(max_tile, avail // per_col)
    if user_tile is not None:
        tile = min(tile, max(128, int(user_tile)))
    return max(128, (tile // 128) * 128)                # always a 128-multiple


# --------------------------------------------------------------------------- #
# Wrapper
# --------------------------------------------------------------------------- #
def generator_forward(x, params, *, tile_b=None, chunk_b=8192,
                      compute_dtype=jnp.bfloat16):
    """x: (B, sz_latent).  params: w* stored (in, out), b* stored (1, out)."""
    w1, b1, w2, b2, w3, b3 = (params["w1"], params["b1"], params["w2"],
                              params["b2"], params["w3"], params["b3"])
    B, L = x.shape
    H = w1.shape[1]
    O = w3.shape[1]
    out_dtype = x.dtype

    # Tiny resident weights: transpose to (out, in), cast MXU operands to bf16;
    # biases stay f32 for the epilogue.  (Few KB -> negligible wrapper cost.
    # x is fed in its natural (B, L) layout: no HBM transpose / cast pass.)
    w1t = w1.astype(compute_dtype).T         # (H, L)
    w2t = w2.astype(compute_dtype).T         # (H, H)
    w3t = w3.astype(compute_dtype).T         # (O, H)
    b1c = b1.astype(jnp.float32).T           # (H, 1)
    b2c = b2.astype(jnp.float32).T           # (H, 1)
    b3c = b3.astype(jnp.float32).T           # (O, 1)

    # ---- VMEM-derived batch tiling (128-lane aligned) ----
    chunk_b = max(128, (int(chunk_b) // 128) * 128)
    vmem_budget = _vmem_budget_bytes()
    tile_cap = _pick_tile_b(L, H, O, x.dtype.itemsize,
                            jnp.dtype(out_dtype).itemsize, chunk_b, vmem_budget,
                            user_tile=tile_b)

    b128 = _round_up(B, 128)
    grid_n = pl.cdiv(b128, tile_cap)
    # Keep a few steps in flight (pipeline overlap; >= 2 per TensorCore on v7x)
    # once the batch is large enough to amortize the per-step overhead.
    grid_n = max(grid_n, min(4, b128 // 1024), 1)
    tile_b_eff = _round_up(pl.cdiv(b128, grid_n), 128)   # <= tile_cap
    grid_n = pl.cdiv(b128, tile_b_eff)
    b_pad = grid_n * tile_b_eff                          # waste < 128 * grid_n cols
    chunk_b = min(chunk_b, tile_b_eff)

    if b_pad != B:
        x_in = jnp.pad(x, ((0, b_pad - B), (0, 0)))      # only the ragged tail
    else:
        x_in = x

    flops = 2 * b_pad * (L * H + H * H + H * O)
    bytes_accessed = int(
        x_in.size * x_in.dtype.itemsize
        + sum(a.size * a.dtype.itemsize for a in (w1t, b1c, w2t, b2c, w3t, b3c))
        + O * b_pad * jnp.dtype(out_dtype).itemsize)

    kernel = functools.partial(generator_kernel, chunk_b=chunk_b)

    out_t = pl.pallas_call(
        kernel,
        out_shape=jax.ShapeDtypeStruct((O, b_pad), out_dtype),
        grid=(grid_n,),
        in_specs=[
            pl.BlockSpec((tile_b_eff, L), lambda i: (i, 0)),  # x, natural layout (pipelined)
            pl.BlockSpec((H, L), lambda i: (0, 0)),           # W1^T (resident)
            pl.BlockSpec((H, 1), lambda i: (0, 0)),           # b1
            pl.BlockSpec((H, H), lambda i: (0, 0)),           # W2^T
            pl.BlockSpec((H, 1), lambda i: (0, 0)),           # b2
            pl.BlockSpec((O, H), lambda i: (0, 0)),           # W3^T
            pl.BlockSpec((O, 1), lambda i: (0, 0)),           # b3
        ],
        out_specs=pl.BlockSpec((O, tile_b_eff), lambda i: (0, i)),
        compiler_params=pltpu.CompilerParams(
            dimension_semantics=("parallel",),     # batch axis shards over v7x's 2 TCs
            vmem_limit_bytes=int(vmem_budget),
        ),
        cost_estimate=pl.CostEstimate(
            flops=flops, transcendentals=0, bytes_accessed=bytes_accessed),
    )(x_in, w1t, b1c, w2t, b2c, w3t, b3c)

    # Feature-major (O, b_pad) -> (B, O).  (8 B/sample; consumers able to take
    # the feature-major slab could skip this final transpose.)
    return out_t[:, :B].T


# --------------------------------------------------------------------------- #
# Params / reference
# --------------------------------------------------------------------------- #
def init_generator_params(key, sz_latent, sz_hidden, sz_out=2, dtype=jnp.float32):
    """Deterministic synthetic init mimicking nn.Linear's uniform(-1/sqrt(fan_in), +)."""
    ks = jax.random.split(key, 6)

    def lin(kw, kb, fan_in, fan_out):
        bound = 1.0 / jnp.sqrt(jnp.asarray(fan_in, dtype))
        w = jax.random.uniform(kw, (fan_in, fan_out), dtype, -bound, bound)
        b = jax.random.uniform(kb, (1, fan_out), dtype, -bound, bound)
        return w, b

    w1, b1 = lin(ks[0], ks[1], sz_latent, sz_hidden)
    w2, b2 = lin(ks[2], ks[3], sz_hidden, sz_hidden)
    w3, b3 = lin(ks[4], ks[5], sz_hidden, sz_out)
    return {"w1": w1, "b1": b1, "w2": w2, "b2": b2, "w3": w3, "b3": b3}


def generator_reference(x, p, compute_dtype=jnp.float32):
    """Pure-JAX reference mirroring the kernel's (bf16 operand, f32 accum) math."""
    cd = compute_dtype
    h1 = jnp.maximum(
        jnp.dot(x.astype(cd), p["w1"].astype(cd), preferred_element_type=jnp.float32)
        + p["b1"].astype(jnp.float32), 0.0)
    h2 = jnp.maximum(
        jnp.dot(h1.astype(cd), p["w2"].astype(cd), preferred_element_type=jnp.float32)
        + p["b2"].astype(jnp.float32), 0.0)
    out = (jnp.dot(h2.astype(cd), p["w3"].astype(cd), preferred_element_type=jnp.float32)
           + p["b3"].astype(jnp.float32))
    return out.astype(x.dtype)


if __name__ == "__main__":
    SZ_LATENT, SZ_HIDDEN, SZ_OUT = 16, 32, 2

    key = jax.random.PRNGKey(0)
    k_x, k_p, k_x2, k_x3 = jax.random.split(key, 4)
    params = init_generator_params(k_p, SZ_LATENT, SZ_HIDDEN, SZ_OUT)

    # Small batch: single-tile, single-chunk path.
    x = jax.random.normal(k_x, (8, SZ_LATENT), jnp.float32)
    out = jax.block_until_ready(generator_forward(x, params))
    ref = generator_reference(x, params, compute_dtype=jnp.bfloat16)
    assert out.shape == (8, SZ_OUT), out.shape
    assert jnp.allclose(out, ref, atol=2e-2, rtol=2e-2), "mismatch vs JAX reference (B=8)"

    # Non-128-multiple batch with a user tile cap: exercises the batch grid + padding.
    x2 = jax.random.normal(k_x2, (300, SZ_LATENT), jnp.float32)
    out2 = jax.block_until_ready(generator_forward(x2, params, tile_b=128))
    ref2 = generator_reference(x2, params, compute_dtype=jnp.bfloat16)
    assert out2.shape == (300, SZ_OUT), out2.shape
    assert jnp.allclose(out2, ref2, atol=2e-2, rtol=2e-2), "mismatch vs JAX reference (B=300)"

    # Larger batch with a small chunk size: exercises the in-kernel chunk loop
    # (full chunks via fori_loop + a 128-aligned remainder chunk).
    x3 = jax.random.normal(k_x3, (1000, SZ_LATENT), jnp.float32)
    out3 = jax.block_until_ready(generator_forward(x3, params, chunk_b=384))
    ref3 = generator_reference(x3, params, compute_dtype=jnp.bfloat16)
    assert out3.shape == (1000, SZ_OUT), out3.shape
    assert jnp.allclose(out3, ref3, atol=2e-2, rtol=2e-2), "mismatch vs JAX reference (B=1000)"

    print("KERNEL_OK")
</pallas_src>

<mosaic_0001>
module attributes {stable_mosaic.version = 11 : i64} {
  func.func @generator_kernel(%arg0: i32, %arg1: memref<128x16xf32, #tpu.memory_space<vmem>>, %arg2: memref<32x16xbf16, #tpu.memory_space<vmem>>, %arg3: memref<32x1xf32, #tpu.memory_space<vmem>>, %arg4: memref<32x32xbf16, #tpu.memory_space<vmem>>, %arg5: memref<32x1xf32, #tpu.memory_space<vmem>>, %arg6: memref<2x32xbf16, #tpu.memory_space<vmem>>, %arg7: memref<2x1xf32, #tpu.memory_space<vmem>>, %arg8: memref<2x128xf32, #tpu.memory_space<vmem>>) attributes {dimension_semantics = [#tpu.dimension_semantics<parallel>], iteration_bounds = array<i64: 1>, scalar_prefetch = 0 : i64, scratch_operands = 0 : i64, tpu.core_type = #tpu.core_type<tc>, window_params = [{transform_indices = @transform_0, window_bounds = array<i64: 128, 16>}, {pipeline_mode = #tpu.pipeline_mode<synchronous>, transform_indices = @transform_1, window_bounds = array<i64: 32, 16>}, {pipeline_mode = #tpu.pipeline_mode<synchronous>, transform_indices = @transform_2, window_bounds = array<i64: 32, 1>}, {pipeline_mode = #tpu.pipeline_mode<synchronous>, transform_indices = @transform_3, window_bounds = array<i64: 32, 32>}, {pipeline_mode = #tpu.pipeline_mode<synchronous>, transform_indices = @transform_4, window_bounds = array<i64: 32, 1>}, {pipeline_mode = #tpu.pipeline_mode<synchronous>, transform_indices = @transform_5, window_bounds = array<i64: 2, 32>}, {pipeline_mode = #tpu.pipeline_mode<synchronous>, transform_indices = @transform_6, window_bounds = array<i64: 2, 1>}, {transform_indices = @transform_7, window_bounds = array<i64: 2, 128>}]} {
    %c0 = arith.constant 0 : index
    %c0_0 = arith.constant 0 : index
    %0 = vector.load %arg2[%c0, %c0_0] : memref<32x16xbf16, #tpu.memory_space<vmem>>, vector<32x16xbf16>
    %c0_1 = arith.constant 0 : index
    %c0_2 = arith.constant 0 : index
    %1 = vector.load %arg3[%c0_1, %c0_2] : memref<32x1xf32, #tpu.memory_space<vmem>>, vector<32x1xf32>
    %c0_3 = arith.constant 0 : index
    %c0_4 = arith.constant 0 : index
    %2 = vector.load %arg4[%c0_3, %c0_4] : memref<32x32xbf16, #tpu.memory_space<vmem>>, vector<32x32xbf16>
    %c0_5 = arith.constant 0 : index
    %c0_6 = arith.constant 0 : index
    %3 = vector.load %arg5[%c0_5, %c0_6] : memref<32x1xf32, #tpu.memory_space<vmem>>, vector<32x1xf32>
    %c0_7 = arith.constant 0 : index
    %c0_8 = arith.constant 0 : index
    %4 = vector.load %arg6[%c0_7, %c0_8] : memref<2x32xbf16, #tpu.memory_space<vmem>>, vector<2x32xbf16>
    %c0_9 = arith.constant 0 : index
    %c0_10 = arith.constant 0 : index
    %5 = vector.load %arg7[%c0_9, %c0_10] : memref<2x1xf32, #tpu.memory_space<vmem>>, vector<2x1xf32>
    %c0_i32 = arith.constant 0 : i32
    %c128_i32 = arith.constant 128 : i32
    %6 = arith.muli %c0_i32, %c128_i32 : i32
    %7 = tpu.assume_multiple %6, 128 : i32
    %8 = arith.index_cast %7 : i32 to index
    %c0_11 = arith.constant 0 : index
    %9 = vector.load %arg1[%8, %c0_11] : memref<128x16xf32, #tpu.memory_space<vmem>>, vector<128x16xf32>
    %10 = arith.truncf %9 : vector<128x16xf32> to vector<128x16xbf16>
    %cst = arith.constant dense<0.000000e+00> : vector<32x128xf32>
    %11 = tpu.matmul %0, %10, %cst {dimension_numbers = #tpu.dot_dimension_numbers<[1], [1], [0], [0], [0, 0, 1, 0], [], []>} : vector<32x16xbf16>, vector<128x16xbf16>, vector<32x128xf32> -> vector<32x128xf32>
    %12 = vector.broadcast %1 : vector<32x1xf32> to vector<32x128xf32>
    %13 = arith.addf %11, %12 : vector<32x128xf32>
    %cst_12 = arith.constant 0.000000e+00 : f32
    %14 = vector.broadcast %cst_12 : f32 to vector<32x128xf32>
    %15 = arith.maximumf %13, %14 : vector<32x128xf32>
    %16 = arith.truncf %15 : vector<32x128xf32> to vector<32x128xbf16>
    %cst_13 = arith.constant dense<0.000000e+00> : vector<32x128xf32>
    %17 = tpu.matmul %2, %16, %cst_13 {dimension_numbers = #tpu.dot_dimension_numbers<[1], [0], [0], [1], [0, 0, 1, 1], [], []>} : vector<32x32xbf16>, vector<32x128xbf16>, vector<32x128xf32> -> vector<32x128xf32>
    %18 = vector.broadcast %3 : vector<32x1xf32> to vector<32x128xf32>
    %19 = arith.addf %17, %18 : vector<32x128xf32>
    %cst_14 = arith.constant 0.000000e+00 : f32
    %20 = vector.broadcast %cst_14 : f32 to vector<32x128xf32>
    %21 = arith.maximumf %19, %20 : vector<32x128xf32>
    %22 = arith.truncf %21 : vector<32x128xf32> to vector<32x128xbf16>
    %cst_15 = arith.constant dense<0.000000e+00> : vector<2x128xf32>
    %23 = tpu.matmul %4, %22, %cst_15 {dimension_numbers = #tpu.dot_dimension_numbers<[1], [0], [0], [1], [0, 0, 1, 1], [], []>} : vector<2x32xbf16>, vector<32x128xbf16>, vector<2x128xf32> -> vector<2x128xf32>
    %24 = vector.broadcast %5 : vector<2x1xf32> to vector<2x128xf32>
    %25 = arith.addf %23, %24 : vector<2x128xf32>
    %c0_16 = arith.constant 0 : index
    %26 = arith.index_cast %7 : i32 to index
    %27 = vector.load %arg8[%c0_16, %26] : memref<2x128xf32, #tpu.memory_space<vmem>>, vector<2x128xf32>
    tpu.vector_store %arg8[%c0_16, %26], %25 {strides = array<i32>} : memref<2x128xf32, #tpu.memory_space<vmem>>, vector<2x128xf32>,
    %c1_i32 = arith.constant 1 : i32
    return
  }
  func.func @transform_0(%arg0: i32) -> (i32, i32) {
    %c0_i32 = arith.constant 0 : i32
    %c0_i32_0 = arith.constant 0 : i32
    return %arg0, %c0_i32 : i32, i32
  }
  func.func @transform_1(%arg0: i32) -> (i32, i32) {
    %c0_i32 = arith.constant 0 : i32
    %c0_i32_0 = arith.constant 0 : i32
    %c0_i32_1 = arith.constant 0 : i32
    return %c0_i32, %c0_i32_0 : i32, i32
  }
  func.func @transform_2(%arg0: i32) -> (i32, i32) {
    %c0_i32 = arith.constant 0 : i32
    %c0_i32_0 = arith.constant 0 : i32
    %c0_i32_1 = arith.constant 0 : i32
    return %c0_i32, %c0_i32_0 : i32, i32
  }
  func.func @transform_3(%arg0: i32) -> (i32, i32) {
    %c0_i32 = arith.constant 0 : i32
    %c0_i32_0 = arith.constant 0 : i32
    %c0_i32_1 = arith.constant 0 : i32
    return %c0_i32, %c0_i32_0 : i32, i32
  }
  func.func @transform_4(%arg0: i32) -> (i32, i32) {
    %c0_i32 = arith.constant 0 : i32
    %c0_i32_0 = arith.constant 0 : i32
    %c0_i32_1 = arith.constant 0 : i32
    return %c0_i32, %c0_i32_0 : i32, i32
  }
  func.func @transform_5(%arg0: i32) -> (i32, i32) {
    %c0_i32 = arith.constant 0 : i32
    %c0_i32_0 = arith.constant 0 : i32
    %c0_i32_1 = arith.constant 0 : i32
    return %c0_i32, %c0_i32_0 : i32, i32
  }
  func.func @transform_6(%arg0: i32) -> (i32, i32) {
    %c0_i32 = arith.constant 0 : i32
    %c0_i32_0 = arith.constant 0 : i32
    %c0_i32_1 = arith.constant 0 : i32
    return %c0_i32, %c0_i32_0 : i32, i32
  }
  func.func @transform_7(%arg0: i32) -> (i32, i32) {
    %c0_i32 = arith.constant 0 : i32
    %c0_i32_0 = arith.constant 0 : i32
    return %c0_i32, %arg0 : i32, i32
  }
}

</mosaic_0001>

<llo_original>
// kernel: tpu_custom_call.1
$region0: #{tpu_custom_call.1}
  #allocation0 [shape = 'u32[]', space=smem, size = 0x4, offset = 0x4, fixed_abs, tag = 'smem constant byte address 0x4 - core index']
  #allocation1 [shape = 'u32[72,128]{1,0:T(1,128)}', space=vmem, size = 0x9000, scoped, tag = 'internal scratch']
  %s0 = inlined_call_operand.vmem [shape: f32[128,16], index: 0, kind: input, shape index: {}]
  %s1 = inlined_call_operand.vmem [shape: bf16[32,16], index: 1, kind: input, shape index: {}]
  %s2 = inlined_call_operand.vmem [shape: f32[32,1], index: 2, kind: input, shape index: {}]
  %s3 = inlined_call_operand.vmem [shape: bf16[32,32], index: 3, kind: input, shape index: {}]
  %s4 = inlined_call_operand.vmem [shape: f32[32,1], index: 4, kind: input, shape index: {}]
  %s5 = inlined_call_operand.vmem [shape: bf16[2,32], index: 5, kind: input, shape index: {}]
  %s6 = inlined_call_operand.vmem [shape: f32[2,1], index: 6, kind: input, shape index: {}]
  %s7 = inlined_call_operand.hbm [shape: f32[2,128], index: 7, kind: output, shape index: {}]
  %s8 = sld [smem:[#allocation0]]
  $region38: #{tpu_custom_call.1} parent=0
    _
  %s10 = ssub.s32 1, %s8
  %s11 = scalar_select 0, %s10, %s8
  $region1: #{tpu_custom_call.1} parent=0
    #allocation2 [shape = 'u8[1024]{0}', space=vmem, size = 0x400, scoped, tag = 'output window, operand 0, single buffered']
    #allocation3 [shape = 's32[1]{0}', space=sflag, size = 0x4, scoped, tag = 'scoped memory for tpu_custom_call.1']
    %12 = vsyncpa [#allocation3], 0
    // Predicated region
    $region2: #{tpu_custom_call.1} parent=1 // pred_check
      _
    $region3: #{tpu_custom_call.1} parent=1 // pred_check_branch
      %14 = sbr.rel (0) target = $region5
    $region4: #{tpu_custom_call.1} parent=1 // pred_region
      _
    $region5: #{tpu_custom_call.1} parent=1 // pred_fallthru
      _
    // Predicated region
    $region6: #{tpu_custom_call.1} parent=1 // pred_check
      _
    $region7: #{tpu_custom_call.1} parent=1 // pred_check_branch
      %16 = sbr.rel (0) target = $region9
    $region8: #{tpu_custom_call.1} parent=1 // pred_region
      _
    $region9: #{tpu_custom_call.1} parent=1 // pred_fallthru
      _
    // Predicated region
    $region10: #{tpu_custom_call.1} parent=1 // pred_check
      _
    $region11: #{tpu_custom_call.1} parent=1 // pred_check_branch
      %18 = sbr.rel (0) target = $region13
    $region12: #{tpu_custom_call.1} parent=1 // pred_region
      _
    $region13: #{tpu_custom_call.1} parent=1 // pred_fallthru
      _
    // Predicated region
    $region14: #{tpu_custom_call.1} parent=1 // pred_check
      _
    $region15: #{tpu_custom_call.1} parent=1 // pred_check_branch
      %20 = sbr.rel (0) target = $region17
    $region16: #{tpu_custom_call.1} parent=1 // pred_region
      _
    $region17: #{tpu_custom_call.1} parent=1 // pred_fallthru
      _
    // Predicated region
    $region18: #{tpu_custom_call.1} parent=1 // pred_check
      _
    $region19: #{tpu_custom_call.1} parent=1 // pred_check_branch
      %22 = sbr.rel (0) target = $region21
    $region20: #{tpu_custom_call.1} parent=1 // pred_region
      _
    $region21: #{tpu_custom_call.1} parent=1 // pred_fallthru
      _
    // Predicated region
    $region22: #{tpu_custom_call.1} parent=1 // pred_check
      _
    $region23: #{tpu_custom_call.1} parent=1 // pred_check_branch
      %24 = sbr.rel (0) target = $region25
    $region24: #{tpu_custom_call.1} parent=1 // pred_region
      _
    $region25: #{tpu_custom_call.1} parent=1 // pred_fallthru
      _
    // Predicated region
    $region26: #{tpu_custom_call.1} parent=1 // pred_check
      _
    $region27: #{tpu_custom_call.1} parent=1 // pred_check_branch
      %26 = sbr.rel (0) target = $region29
    $region28: #{tpu_custom_call.1} parent=1 // pred_region
      _
    $region29: #{tpu_custom_call.1} parent=1 // pred_fallthru
      _
    %v28 = vld [vmem:[%s1] sm:$0xf]
    %v29 = vld [vmem:[%s1 + $0x4] sm:$0xf]
    %v30 = vld [vmem:[%s1 + $0x8] sm:$0xf]
    %v31 = vld [vmem:[%s1 + $0xc] sm:$0xf]
    %v32 = vld [vmem:[%s2] sm:$0xff]
    %v33 = vld [vmem:[%s2 + $0x8] sm:$0xff]
    %v34 = vld [vmem:[%s2 + $0x10] sm:$0xff]
    %v35 = vld [vmem:[%s2 + $0x18] sm:$0xff]
    %v36 = vld [vmem:[%s3] sm:$0xf]
    %v37 = vld [vmem:[%s3 + $0x4] sm:$0xf]
    %v38 = vld [vmem:[%s3 + $0x8] sm:$0xf]
    %v39 = vld [vmem:[%s3 + $0xc] sm:$0xf]
    %v40 = vld [vmem:[%s4] sm:$0xff]
    %v41 = vld [vmem:[%s4 + $0x8] sm:$0xff]
    %v42 = vld [vmem:[%s4 + $0x10] sm:$0xff]
    %v43 = vld [vmem:[%s4 + $0x18] sm:$0xff]
    %v44 = vld [vmem:[%s5] sm:$0x1]
    %v45 = vld [vmem:[%s6] sm:$0x3]
    %v46 = vld [vmem:[%s0] sm:$0xff]
    %v47 = vld [vmem:[%s0 + $0x8] sm:$0xff]
    %v48 = vld [vmem:[%s0 + $0x10] sm:$0xff]
    %v49 = vld [vmem:[%s0 + $0x18] sm:$0xff]
    %v50 = vld [vmem:[%s0 + $0x20] sm:$0xff]
    %v51 = vld [vmem:[%s0 + $0x28] sm:$0xff]
    %v52 = vld [vmem:[%s0 + $0x30] sm:$0xff]
    %v53 = vld [vmem:[%s0 + $0x38] sm:$0xff]
    %v54 = vld [vmem:[%s0 + $0x40] sm:$0xff]
    %v55 = vld [vmem:[%s0 + $0x48] sm:$0xff]
    %v56 = vld [vmem:[%s0 + $0x50] sm:$0xff]
    %v57 = vld [vmem:[%s0 + $0x58] sm:$0xff]
    %v58 = vld [vmem:[%s0 + $0x60] sm:$0xff]
    %v59 = vld [vmem:[%s0 + $0x68] sm:$0xff]
    %v60 = vld [vmem:[%s0 + $0x70] sm:$0xff]
    %v61 = vld [vmem:[%s0 + $0x78] sm:$0xff]
    %v62 = vpack.c.bf16 %v47, %v46
    %v63 = vpack.c.bf16 %v49, %v48
    %v64 = vpack.c.bf16 %v51, %v50
    %v65 = vpack.c.bf16 %v53, %v52
    %v66 = vpack.c.bf16 %v55, %v54
    %v67 = vpack.c.bf16 %v57, %v56
    %v68 = vpack.c.bf16 %v59, %v58
    %v69 = vpack.c.bf16 %v61, %v60
    %71 = vset.pattern.permute.xlu0 0
    %72 = vperm.xlu0 %71, %v32
    %v73 = vpop.permute.xlu0 %72
    %76 = vset.pattern.permute.xlu0 0
    %77 = vperm.xlu0 %76, %v33
    %v78 = vpop.permute.xlu0 %77
    %81 = vset.pattern.permute.xlu0 0
    %82 = vperm.xlu0 %81, %v34
    %v83 = vpop.permute.xlu0 %82
    %86 = vset.pattern.permute.xlu0 0
    %87 = vperm.xlu0 %86, %v35
    %v88 = vpop.permute.xlu0 %87
    %v94 = vunpack.c.l.b16 %v28
    %v95 = vunpack.c.l.b16 %v29
    %v96 = vunpack.c.l.b16 %v30
    %v97 = vunpack.c.l.b16 %v31
    %v98 = vpack.c.b16 %v95, %v94
    %v99 = vpack.c.b16 %v97, %v96
    %vm100 = vcmask 130048
    %v102 = vsel %vm100, %v98, 0
    %v105 = vsel %vm100, %v99, 0
    %v108 = vsel %vm100, %v62, 0
    %v111 = vsel %vm100, %v63, 0
    %v114 = vsel %vm100, %v64, 0
    %v117 = vsel %vm100, %v65, 0
    %v120 = vsel %vm100, %v66, 0
    %v123 = vsel %vm100, %v67, 0
    %v126 = vsel %vm100, %v68, 0
    %v129 = vsel %vm100, %v69, 0
    %131 = vmatpush.bf16.xpose.msra.mxu0 %v129
    %132 = vmatpush.bf16.xpose.msra.mxu0 %v126
    %133 = vmatpush.bf16.xpose.msra.mxu0 %v123
    %134 = vmatpush.bf16.xpose.msra.mxu0 %v120
    %135 = vmatpush.bf16.xpose.msra.mxu0 %v117
    %136 = vmatpush.bf16.xpose.msra.mxu0 %v114
    %137 = vmatpush.bf16.xpose.msra.mxu0 %v111
    %138 = vmatpush.bf16.xpose.msra.mxu0 %v108
    %139 = vmatmul.bf16.gmra.mxu0 %v102
    %v140 = vpop.f32.mrf.mxu0
    %v141 = vadd.f32 %v73, %v140
    %v142 = vpop.f32.mrf.mxu0
    %v143 = vadd.f32 %v78, %v142
    %144 = vmatmul.bf16.gmra.mxu0 %v105
    %v145 = vpop.f32.mrf.mxu0
    %v146 = vadd.f32 %v83, %v145
    %v147 = vpop.f32.mrf.mxu0
    %v148 = vadd.f32 %v88, %v147
    %149 = vdwg.mxu0
    %v150 = vmax.f32 %v141, 0.0
    %v151 = vmax.f32 %v143, 0.0
    %v152 = vmax.f32 %v146, 0.0
    %v153 = vmax.f32 %v148, 0.0
    %v154 = vpack.c.bf16 %v151, %v150
    %v155 = vpack.c.bf16 %v153, %v152
    %157 = vset.pattern.permute.xlu0 0
    %158 = vperm.xlu0 %157, %v40
    %v159 = vpop.permute.xlu0 %158
    %162 = vset.pattern.permute.xlu0 0
    %163 = vperm.xlu0 %162, %v41
    %v164 = vpop.permute.xlu0 %163
    %167 = vset.pattern.permute.xlu0 0
    %168 = vperm.xlu0 %167, %v42
    %v169 = vpop.permute.xlu0 %168
    %172 = vset.pattern.permute.xlu0 0
    %173 = vperm.xlu0 %172, %v43
    %v174 = vpop.permute.xlu0 %173
    %v180 = vunpack.c.l.b16 %v36
    %v181 = vunpack.c.l.b16 %v37
    %v182 = vunpack.c.l.b16 %v38
    %v183 = vunpack.c.l.b16 %v39
    %v184 = vpack.c.b16 %v181, %v180
    %v185 = vpack.c.b16 %v183, %v182
    %vm186 = vcmask 261120
    %v188 = vsel %vm186, %v184, 0
    %v191 = vsel %vm186, %v185, 0
    %193 = vmatpush.bf16.msra.mxu0 0
    %194 = vmatpush.bf16.msra.mxu0 0
    %195 = vmatpush.bf16.msra.mxu0 0
    %196 = vmatpush.bf16.msra.mxu0 0
    %197 = vmatpush.bf16.msra.mxu0 0
    %198 = vmatpush.bf16.msra.mxu0 0
    %199 = vmatpush.bf16.msra.mxu0 %v155
    %200 = vmatpush.bf16.msra.mxu0 %v154
    %201 = vmatmul.bf16.gmra.mxu0 %v188
    %v202 = vpop.f32.mrf.mxu0
    %v203 = vadd.f32 %v159, %v202
    %v204 = vpop.f32.mrf.mxu0
    %v205 = vadd.f32 %v164, %v204
    %206 = vmatmul.bf16.gmra.mxu0 %v191
    %v207 = vpop.f32.mrf.mxu0
    %v208 = vadd.f32 %v169, %v207
    %v209 = vpop.f32.mrf.mxu0
    %v210 = vadd.f32 %v174, %v209
    %211 = vdwg.mxu0
    %v212 = vmax.f32 %v203, 0.0
    %v213 = vmax.f32 %v205, 0.0
    %v214 = vmax.f32 %v208, 0.0
    %v215 = vmax.f32 %v210, 0.0
    %v216 = vpack.c.bf16 %v213, %v212
    %v217 = vpack.c.bf16 %v215, %v214
    %219 = vset.pattern.permute.xlu0 0
    %220 = vperm.xlu0 %219, %v45
    %v221 = vpop.permute.xlu0 %220
    %v224 = vsel %vm186, %v44, 0
    %226 = vmatpush.bf16.msra.mxu0 0
    %227 = vmatpush.bf16.msra.mxu0 0
    %228 = vmatpush.bf16.msra.mxu0 0
    %229 = vmatpush.bf16.msra.mxu0 0
    %230 = vmatpush.bf16.msra.mxu0 0
    %231 = vmatpush.bf16.msra.mxu0 0
    %232 = vmatpush.bf16.msra.mxu0 %v217
    %233 = vmatpush.bf16.msra.mxu0 %v216
    %234 = vmatmul.bf16.gmra.mxu0 %v224
    %v235 = vpop.f32.mrf.mxu0
    %v236 = vadd.f32 %v221, %v235
    %v237 = vpop.f32.mrf.mxu0
    %238 = vdwg.mxu0
    %239 = vst [vmem:[#allocation2] sm:$0x3] %v236
    // Predicated region
    $region30: #{tpu_custom_call.1} parent=1 // pred_check
      _
    $region31: #{tpu_custom_call.1} parent=1 // pred_check_branch
      %241 = sbr.rel (0) target = $region33
    $region32: #{tpu_custom_call.1} parent=1 // pred_region
      %243 = vsyncadd [#allocation3], 0
      %s245 = sshll.u32 [#allocation2], 4
      %s246 = int_to_ptr.vmem [resolvable:$true] %s245
      %s247 = sshll.u32 %s7, 4
      %s248 = int_to_ptr.hbm [resolvable:$true] %s247
      %250 = dma.vmem_to_hbm [thread:$0]  %s246, 32, %s248, [#allocation3]
    $region33: #{tpu_custom_call.1} parent=1 // pred_fallthru
      _
    // Predicated region
    $region34: #{tpu_custom_call.1} parent=1 // pred_check
      _
    $region35: #{tpu_custom_call.1} parent=1 // pred_check_branch
      %252 = sbr.rel (0) target = $region37
    $region36: #{tpu_custom_call.1} parent=1 // pred_region
      %254 = dma.done [#allocation3], 32
    $region37: #{tpu_custom_call.1} parent=1 // pred_fallthru
      _
    %255 = vsyncpa [#allocation3], 1

</llo_original>
